<compile_context>
chip_gen: v7x
topology: tpu7x:2x2x1
jax: 0.10.0
libtpu: 0.0.40
codegen_flags: <defaults>
</compile_context>

<pallas_src>
import jax
import jax.numpy as jnp
from jax.experimental import pallas as pl
from jax.experimental.pallas import tpu as pltpu


def _mlp_kernel(x_ref, w1_ref, b1_ref, w2_ref, b2_ref, o_ref):
    """One row-tile of the fused residual MLP (lane-dense packed layout).

    x_ref : (tm, DBLK)   packed activations (f32 or bf16)
    w1_ref: (DBLK, FBLK) block-diagonal weight 1
    b1_ref: (1, FBLK)    tiled bias 1 (f32)
    w2_ref: (FBLK, DBLK) block-diagonal weight 2
    b2_ref: (1, DBLK)    tiled bias 2 (f32)
    o_ref : (tm, DBLK)   packed output (original activation dtype)
    """
    x = x_ref[...]
    # MXU matmuls in the weights' dtype with f32 accumulation; all elementwise
    # work (bias, ReLU, residual) stays in f32 on the VPU.
    h = jnp.dot(x.astype(w1_ref.dtype), w1_ref[...],
                preferred_element_type=jnp.float32) + b1_ref[...]
    h = jnp.maximum(h, 0.0)                                       # ReLU
    y = jnp.dot(h.astype(w2_ref.dtype), w2_ref[...],
                preferred_element_type=jnp.float32) + b2_ref[...]
    o_ref[...] = (x.astype(jnp.float32) + y).astype(o_ref.dtype)  # residual


def _vmem_capacity_bytes():
    # Perf-only hardware query; fall back to the v7x per-TensorCore floor.
    try:
        return int(pltpu.get_tpu_info().vmem_capacity_bytes)
    except Exception:
        return 64 * 1024 * 1024


def _choose_pack(d):
    """Rows packed per 128-lane vreg row (lane-dense layout)."""
    if d < 128 and 128 % d == 0:
        return 128 // d
    return 1


def _choose_row_tile(n_packed, dblk, fblk, x_itemsize, w_itemsize):
    """Pick the packed-row tile tm (multiple of 8) and padding for n_packed."""
    # Per-TensorCore-safe VMEM bound: v7x has 64 MiB/TC even if the query
    # reports an aggregated / larger number.
    vmem_cap = min(_vmem_capacity_bytes(), 64 * 1024 * 1024)
    budget = vmem_cap // 2  # headroom for compiler temps / regalloc

    # Weights counted double-buffered (worst case) + biases.
    weight_bytes = 2 * 2 * dblk * fblk * w_itemsize + 2 * (fblk + dblk) * 4
    # Per packed row: double-buffered x and out tiles + f32 (tm,FBLK)/(tm,DBLK)
    # intermediates (h / y).
    per_row = 4 * dblk * x_itemsize + 4 * (fblk + dblk)

    tm = (budget - weight_bytes) // per_row
    # Floor 256 / cap 4096 packed rows: each step moves ~1-2 MiB of x for
    # DBLK=128 f32, well above the ~0.35 us per-step grid overhead.
    tm = int(max(256, min(tm, 4096)))

    n_pad8 = pl.cdiv(n_packed, 8) * 8
    tm = min(tm, n_pad8)
    # v7x megacore: for large problems keep >= 8 grid steps (>= 4 per core) so
    # each TensorCore still double-buffers; harmless on 1-TC v5e/v6e.
    if n_pad8 >= 8 * 1024 and n_pad8 // tm < 8:
        tm = max(1024, ((n_pad8 // 8) // 8) * 8)
    tm = max(8, (tm // 8) * 8)

    n_pad = pl.cdiv(n_packed, tm) * tm
    return tm, n_pad - n_packed, vmem_cap


def two_layer_mlp(x, w1, b1, w2, b2, *, matmul_dtype=None, row_tile=None):
    """Fused residual MLP: x + linear2(relu(linear1(x))).

    x : (..., model_dim)
    w1: (model_dim, feedford_dim)   (= linear1.weight.T)
    b1: (feedford_dim,)
    w2: (feedford_dim, model_dim)   (= linear2.weight.T)
    b2: (model_dim,)
    matmul_dtype: optional reduced dtype (e.g. jnp.bfloat16) for the MXU
        operands AND the activations at the HBM boundary; accumulation and the
        bias/ReLU/residual epilogue stay in f32 (residual uses the rounded x).
    """
    orig_shape = x.shape
    orig_dtype = x.dtype
    d = orig_shape[-1]
    f = w1.shape[1]
    assert w1.shape == (d, f) and w2.shape == (f, d)
    assert b1.shape == (f,) and b2.shape == (d,)

    pack = _choose_pack(d)
    dblk, fblk = d * pack, f * pack

    # Lane-dense block-diagonal weights and tiled biases (tiny; VMEM-resident).
    w1_blk = jnp.kron(jnp.eye(pack, dtype=w1.dtype), w1)      # (dblk, fblk)
    w2_blk = jnp.kron(jnp.eye(pack, dtype=w2.dtype), w2)      # (fblk, dblk)
    b1_blk = jnp.tile(b1.astype(jnp.float32), pack).reshape(1, fblk)
    b2_blk = jnp.tile(b2.astype(jnp.float32), pack).reshape(1, dblk)

    if matmul_dtype is not None:
        # Cast activations too: x/out dominate HBM traffic on this kernel.
        w1_blk = w1_blk.astype(matmul_dtype)
        w2_blk = w2_blk.astype(matmul_dtype)
        x = x.astype(matmul_dtype)

    x2 = x.reshape(-1, d)
    n = x2.shape[0]
    n_packed = pl.cdiv(n, pack)

    x_itemsize = jnp.dtype(x2.dtype).itemsize
    w_itemsize = jnp.dtype(w1_blk.dtype).itemsize

    if row_tile is None:
        tm, pad_packed, vmem_cap = _choose_row_tile(
            n_packed, dblk, fblk, x_itemsize, w_itemsize)
    else:
        tm = max(8, (int(row_tile) // 8) * 8)
        pad_packed = pl.cdiv(n_packed, tm) * tm - n_packed
        vmem_cap = min(_vmem_capacity_bytes(), 64 * 1024 * 1024)

    n_pad_packed = n_packed + pad_packed
    total_rows = n_pad_packed * pack
    if total_rows != n:
        # Padded rows compute on zeros and are sliced off after the call.
        x2 = jnp.pad(x2, ((0, total_rows - n), (0, 0)))
    x_blk = x2.reshape(n_pad_packed, dblk)   # pure reshape: rows are contiguous

    grid = (n_pad_packed // tm,)

    flops = 4 * n_pad_packed * dblk * fblk   # two matmuls, 2*M*K*N each
    bytes_accessed = (2 * dblk * fblk * w_itemsize + (fblk + dblk) * 4
                      + 2 * n_pad_packed * dblk * x_itemsize)
    cost = pl.CostEstimate(flops=flops, transcendentals=0,
                           bytes_accessed=bytes_accessed)

    out_blk = pl.pallas_call(
        _mlp_kernel,
        out_shape=jax.ShapeDtypeStruct((n_pad_packed, dblk), orig_dtype),
        grid_spec=pltpu.PrefetchScalarGridSpec(
            num_scalar_prefetch=0,
            grid=grid,
            in_specs=[
                pl.BlockSpec((tm, dblk), lambda i: (i, 0)),     # x rows tile
                pl.BlockSpec((dblk, fblk), lambda i: (0, 0)),   # W1_blk (resident)
                pl.BlockSpec((1, fblk), lambda i: (0, 0)),      # b1 tiled
                pl.BlockSpec((fblk, dblk), lambda i: (0, 0)),   # W2_blk (resident)
                pl.BlockSpec((1, dblk), lambda i: (0, 0)),      # b2 tiled
            ],
            out_specs=pl.BlockSpec((tm, dblk), lambda i: (i, 0)),
        ),
        compiler_params=pltpu.CompilerParams(
            dimension_semantics=("parallel",),
            vmem_limit_bytes=int(vmem_cap)),
        cost_estimate=cost,
    )(x_blk, w1_blk, b1_blk, w2_blk, b2_blk)

    out = out_blk.reshape(total_rows, d)
    if total_rows != n:
        out = out[:n]
    return out.reshape(orig_shape)


def reference(x, w1, b1, w2, b2):
    h = jnp.maximum(
        jnp.dot(x, w1, precision=jax.lax.Precision.HIGHEST) + b1, 0.0)
    return x + jnp.dot(h, w2, precision=jax.lax.Precision.HIGHEST) + b2


if __name__ == "__main__":
    # Small shapes consistent with the module's forward:
    # input (batch, seq, model_dim); model_dim=32, feedford_dim=64.
    batch, seq, model_dim, feedford_dim = 2, 8, 32, 64

    key = jax.random.PRNGKey(0)
    kx, kw1, kb1, kw2, kb2 = jax.random.split(key, 5)

    x = jax.random.normal(kx, (batch, seq, model_dim), dtype=jnp.float32)

    # Deterministic parameter init (uniform, roughly matching nn.Linear scale).
    lim1 = 1.0 / (model_dim ** 0.5)
    lim2 = 1.0 / (feedford_dim ** 0.5)
    w1 = jax.random.uniform(kw1, (model_dim, feedford_dim), jnp.float32, -lim1, lim1)
    b1 = jax.random.uniform(kb1, (feedford_dim,), jnp.float32, -lim1, lim1)
    w2 = jax.random.uniform(kw2, (feedford_dim, model_dim), jnp.float32, -lim2, lim2)
    b2 = jax.random.uniform(kb2, (model_dim,), jnp.float32, -lim2, lim2)

    ref = reference(x, w1, b1, w2, b2)

    # Full-precision path.
    out = jax.block_until_ready(two_layer_mlp(x, w1, b1, w2, b2))
    assert out.shape == x.shape and out.dtype == x.dtype
    assert jnp.allclose(out, ref, atol=1e-4, rtol=1e-4), "f32 mismatch vs reference"

    # bf16 activation+weight path (f32 accumulation + f32 epilogue).
    out_bf16 = jax.block_until_ready(
        two_layer_mlp(x, w1, b1, w2, b2, matmul_dtype=jnp.bfloat16))
    assert out_bf16.shape == x.shape and out_bf16.dtype == x.dtype
    assert jnp.allclose(out_bf16, ref, atol=5e-2, rtol=5e-2), "bf16 mismatch vs reference"

    print("KERNEL_OK")
</pallas_src>

<mosaic_0001>
module attributes {stable_mosaic.version = 11 : i64} {
  func.func @_mlp_kernel(%arg0: i32, %arg1: memref<8x128xf32, #tpu.memory_space<vmem>>, %arg2: memref<128x256xf32, #tpu.memory_space<vmem>>, %arg3: memref<1x256xf32, #tpu.memory_space<vmem>>, %arg4: memref<256x128xf32, #tpu.memory_space<vmem>>, %arg5: memref<1x128xf32, #tpu.memory_space<vmem>>, %arg6: memref<8x128xf32, #tpu.memory_space<vmem>>) attributes {dimension_semantics = [#tpu.dimension_semantics<parallel>], iteration_bounds = array<i64: 1>, scalar_prefetch = 0 : i64, scratch_operands = 0 : i64, tpu.core_type = #tpu.core_type<tc>, window_params = [{transform_indices = @transform_0, window_bounds = array<i64: 8, 128>}, {pipeline_mode = #tpu.pipeline_mode<synchronous>, transform_indices = @transform_1, window_bounds = array<i64: 128, 256>}, {pipeline_mode = #tpu.pipeline_mode<synchronous>, transform_indices = @transform_2, window_bounds = array<i64: 1, 256>}, {pipeline_mode = #tpu.pipeline_mode<synchronous>, transform_indices = @transform_3, window_bounds = array<i64: 256, 128>}, {pipeline_mode = #tpu.pipeline_mode<synchronous>, transform_indices = @transform_4, window_bounds = array<i64: 1, 128>}, {transform_indices = @transform_5, window_bounds = array<i64: 8, 128>}]} {
    %c0 = arith.constant 0 : index
    %c0_0 = arith.constant 0 : index
    %0 = vector.load %arg1[%c0, %c0_0] : memref<8x128xf32, #tpu.memory_space<vmem>>, vector<8x128xf32>
    %c0_1 = arith.constant 0 : index
    %c0_2 = arith.constant 0 : index
    %1 = vector.load %arg2[%c0_1, %c0_2] : memref<128x256xf32, #tpu.memory_space<vmem>>, vector<128x256xf32>
    %cst = arith.constant dense<0.000000e+00> : vector<8x256xf32>
    %2 = tpu.matmul %0, %1, %cst {dimension_numbers = #tpu.dot_dimension_numbers<[1], [0], [0], [1], [0, 0, 1, 1], [], []>} : vector<8x128xf32>, vector<128x256xf32>, vector<8x256xf32> -> vector<8x256xf32>
    %c0_3 = arith.constant 0 : index
    %c0_4 = arith.constant 0 : index
    %3 = vector.load %arg3[%c0_3, %c0_4] : memref<1x256xf32, #tpu.memory_space<vmem>>, vector<1x256xf32>
    %4 = vector.broadcast %3 : vector<1x256xf32> to vector<8x256xf32>
    %5 = arith.addf %2, %4 : vector<8x256xf32>
    %cst_5 = arith.constant 0.000000e+00 : f32
    %6 = vector.broadcast %cst_5 : f32 to vector<8x256xf32>
    %7 = arith.maximumf %5, %6 : vector<8x256xf32>
    %c0_6 = arith.constant 0 : index
    %c0_7 = arith.constant 0 : index
    %8 = vector.load %arg4[%c0_6, %c0_7] : memref<256x128xf32, #tpu.memory_space<vmem>>, vector<256x128xf32>
    %cst_8 = arith.constant dense<0.000000e+00> : vector<8x128xf32>
    %9 = tpu.matmul %7, %8, %cst_8 {dimension_numbers = #tpu.dot_dimension_numbers<[1], [0], [0], [1], [0, 0, 1, 1], [], []>} : vector<8x256xf32>, vector<256x128xf32>, vector<8x128xf32> -> vector<8x128xf32>
    %c0_9 = arith.constant 0 : index
    %c0_10 = arith.constant 0 : index
    %10 = vector.load %arg5[%c0_9, %c0_10] : memref<1x128xf32, #tpu.memory_space<vmem>>, vector<1x128xf32>
    %11 = vector.broadcast %10 : vector<1x128xf32> to vector<8x128xf32>
    %12 = arith.addf %9, %11 : vector<8x128xf32>
    %13 = arith.addf %0, %12 : vector<8x128xf32>
    %c0_11 = arith.constant 0 : index
    %c0_12 = arith.constant 0 : index
    %14 = vector.load %arg6[%c0_11, %c0_12] : memref<8x128xf32, #tpu.memory_space<vmem>>, vector<8x128xf32>
    tpu.vector_store %arg6[%c0_11, %c0_12], %13 {strides = array<i32>} : memref<8x128xf32, #tpu.memory_space<vmem>>, vector<8x128xf32>,
    return
  }
  func.func @transform_0(%arg0: i32) -> (i32, i32) {
    %c0_i32 = arith.constant 0 : i32
    %c0_i32_0 = arith.constant 0 : i32
    return %arg0, %c0_i32 : i32, i32
  }
  func.func @transform_1(%arg0: i32) -> (i32, i32) {
    %c0_i32 = arith.constant 0 : i32
    %c0_i32_0 = arith.constant 0 : i32
    %c0_i32_1 = arith.constant 0 : i32
    return %c0_i32, %c0_i32_0 : i32, i32
  }
  func.func @transform_2(%arg0: i32) -> (i32, i32) {
    %c0_i32 = arith.constant 0 : i32
    %c0_i32_0 = arith.constant 0 : i32
    %c0_i32_1 = arith.constant 0 : i32
    return %c0_i32, %c0_i32_0 : i32, i32
  }
  func.func @transform_3(%arg0: i32) -> (i32, i32) {
    %c0_i32 = arith.constant 0 : i32
    %c0_i32_0 = arith.constant 0 : i32
    %c0_i32_1 = arith.constant 0 : i32
    return %c0_i32, %c0_i32_0 : i32, i32
  }
  func.func @transform_4(%arg0: i32) -> (i32, i32) {
    %c0_i32 = arith.constant 0 : i32
    %c0_i32_0 = arith.constant 0 : i32
    %c0_i32_1 = arith.constant 0 : i32
    return %c0_i32, %c0_i32_0 : i32, i32
  }
  func.func @transform_5(%arg0: i32) -> (i32, i32) {
    %c0_i32 = arith.constant 0 : i32
    %c0_i32_0 = arith.constant 0 : i32
    return %arg0, %c0_i32 : i32, i32
  }
}

</mosaic_0001>

<llo_original>
// kernel: tpu_custom_call.1
$region0: #{tpu_custom_call.1}
  #allocation0 [shape = 'u32[]', space=smem, size = 0x4, offset = 0x4, fixed_abs, tag = 'smem constant byte address 0x4 - core index']
  #allocation1 [shape = 'u32[144,128]{1,0:T(1,128)}', space=vmem, size = 0x12000, scoped, tag = 'internal scratch']
  %s0 = inlined_call_operand.hbm [shape: f32[8,128], index: 0, kind: input, shape index: {}]
  %s1 = inlined_call_operand.hbm [shape: f32[128,256], index: 1, kind: input, shape index: {}]
  %s2 = inlined_call_operand.hbm [shape: f32[1,256], index: 2, kind: input, shape index: {}]
  %s3 = inlined_call_operand.hbm [shape: f32[256,128], index: 3, kind: input, shape index: {}]
  %s4 = inlined_call_operand.hbm [shape: f32[1,128], index: 4, kind: input, shape index: {}]
  %s5 = inlined_call_operand.hbm [shape: f32[8,128], index: 5, kind: output, shape index: {}]
  %s6 = sld [smem:[#allocation0]]
  $region50: #{tpu_custom_call.1} parent=0
    _
  %s8 = ssub.s32 1, %s6
  %s9 = scalar_select 0, %s8, %s6
  $region1: #{tpu_custom_call.1} parent=0
    #allocation2 [shape = 'u8[4096]{0}', space=vmem, size = 0x1000, scoped, tag = 'input window, operand 0, single buffered']
    #allocation3 [shape = 's32[1]{0}', space=sflag, size = 0x4, scoped, tag = 'scoped memory for tpu_custom_call.1']
    #allocation4 [shape = 's32[1]{0}', space=sflag, size = 0x4, scoped, tag = 'scoped memory for tpu_custom_call.1']
    #allocation5 [shape = 'u8[131072]{0}', space=vmem, size = 0x20000, scoped, tag = 'input window, operand 1, single buffered']
    #allocation6 [shape = 's32[1]{0}', space=sflag, size = 0x4, scoped, tag = 'scoped memory for tpu_custom_call.1']
    #allocation7 [shape = 'u8[1024]{0}', space=vmem, size = 0x400, scoped, tag = 'input window, operand 2, single buffered']
    #allocation8 [shape = 'u8[131072]{0}', space=vmem, size = 0x20000, scoped, tag = 'input window, operand 3, single buffered']
    #allocation9 [shape = 's32[1]{0}', space=sflag, size = 0x4, scoped, tag = 'scoped memory for tpu_custom_call.1']
    #allocation10 [shape = 'u8[512]{0}', space=vmem, size = 0x400, scoped, tag = 'input window, operand 4, single buffered']
    #allocation11 [shape = 'u8[4096]{0}', space=vmem, size = 0x1000, scoped, tag = 'output window, operand 0, single buffered']
    %10 = vsyncpa [#allocation3], 0
    %11 = vsyncpa [#allocation6], 0
    %12 = vsyncpa [#allocation9], 0
    %13 = vsyncpa [#allocation4], 0
    // Predicated region
    $region2: #{tpu_custom_call.1} parent=1 // pred_check
      _
    $region3: #{tpu_custom_call.1} parent=1 // pred_check_branch
      %15 = sbr.rel (0) target = $region5
    $region4: #{tpu_custom_call.1} parent=1 // pred_region
      %s17 = ssub.s32 128, 128
      %18 = vsyncadd [#allocation3], %s17
      %s20 = sshll.u32 [#allocation2], 4
      %s21 = int_to_ptr.vmem [resolvable:$true] %s20
      %23 = dma.hbm_to_vmem [thread:$0]  %s0, 128, %s21, [#allocation3]
    $region5: #{tpu_custom_call.1} parent=1 // pred_fallthru
      _
    // Predicated region
    $region6: #{tpu_custom_call.1} parent=1 // pred_check
      _
    $region7: #{tpu_custom_call.1} parent=1 // pred_check_branch
      %25 = sbr.rel (0) target = $region9
    $region8: #{tpu_custom_call.1} parent=1 // pred_region
      %s27 = ssub.s32 4096, 4096
      %28 = vsyncadd [#allocation6], %s27
      %s29 = sshll.u32 [#allocation5], 4
      %s30 = int_to_ptr.vmem [resolvable:$true] %s29
      %35 = dma.hbm_to_vmem [thread:$0]  %s1, 4096, %s30, [#allocation6], 256, 256, 16
    $region9: #{tpu_custom_call.1} parent=1 // pred_fallthru
      _
    // Predicated region
    $region10: #{tpu_custom_call.1} parent=1 // pred_check
      _
    $region11: #{tpu_custom_call.1} parent=1 // pred_check_branch
      %37 = sbr.rel (0) target = $region13
    $region12: #{tpu_custom_call.1} parent=1 // pred_region
      %s39 = ssub.s32 32, 32
      %40 = vsyncadd [#allocation6], %s39
      %s42 = sshll.u32 [#allocation7], 4
      %s43 = int_to_ptr.vmem [resolvable:$true] %s42
      %45 = dma.hbm_to_vmem [thread:$0]  %s2, 32, %s43, [#allocation6]
    $region13: #{tpu_custom_call.1} parent=1 // pred_fallthru
      _
    // Predicated region
    $region14: #{tpu_custom_call.1} parent=1 // pred_check
      _
    $region15: #{tpu_custom_call.1} parent=1 // pred_check_branch
      %47 = sbr.rel (0) target = $region17
    $region16: #{tpu_custom_call.1} parent=1 // pred_region
      %s49 = ssub.s32 4096, 4096
      %50 = vsyncadd [#allocation9], %s49
      %s51 = sshll.u32 [#allocation8], 4
      %s52 = int_to_ptr.vmem [resolvable:$true] %s51
      %57 = dma.hbm_to_vmem [thread:$0]  %s3, 4096, %s52, [#allocation9], 128, 128, 8
    $region17: #{tpu_custom_call.1} parent=1 // pred_fallthru
      _
    // Predicated region
    $region18: #{tpu_custom_call.1} parent=1 // pred_check
      _
    $region19: #{tpu_custom_call.1} parent=1 // pred_check_branch
      %59 = sbr.rel (0) target = $region21
    $region20: #{tpu_custom_call.1} parent=1 // pred_region
      %s61 = ssub.s32 16, 16
      %62 = vsyncadd [#allocation9], %s61
      %s64 = sshll.u32 [#allocation10], 4
      %s65 = int_to_ptr.vmem [resolvable:$true] %s64
      %67 = dma.hbm_to_vmem [thread:$0]  %s4, 16, %s65, [#allocation9]
    $region21: #{tpu_custom_call.1} parent=1 // pred_fallthru
      _
    // Predicated region
    $region22: #{tpu_custom_call.1} parent=1 // pred_check
      _
    $region23: #{tpu_custom_call.1} parent=1 // pred_check_branch
      %69 = sbr.rel (0) target = $region25
    $region24: #{tpu_custom_call.1} parent=1 // pred_region
      %70 = dma.done [#allocation3], 128
    $region25: #{tpu_custom_call.1} parent=1 // pred_fallthru
      _
    // Predicated region
    $region26: #{tpu_custom_call.1} parent=1 // pred_check
      _
    $region27: #{tpu_custom_call.1} parent=1 // pred_check_branch
      %72 = sbr.rel (0) target = $region29
    $region28: #{tpu_custom_call.1} parent=1 // pred_region
      %73 = dma.done [#allocation6], 4096
    $region29: #{tpu_custom_call.1} parent=1 // pred_fallthru
      _
    // Predicated region
    $region30: #{tpu_custom_call.1} parent=1 // pred_check
      _
    $region31: #{tpu_custom_call.1} parent=1 // pred_check_branch
      %75 = sbr.rel (0) target = $region33
    $region32: #{tpu_custom_call.1} parent=1 // pred_region
      %76 = dma.done [#allocation6], 32
    $region33: #{tpu_custom_call.1} parent=1 // pred_fallthru
      _
    // Predicated region
    $region34: #{tpu_custom_call.1} parent=1 // pred_check
      _
    $region35: #{tpu_custom_call.1} parent=1 // pred_check_branch
      %78 = sbr.rel (0) target = $region37
    $region36: #{tpu_custom_call.1} parent=1 // pred_region
      %79 = dma.done [#allocation9], 4096
    $region37: #{tpu_custom_call.1} parent=1 // pred_fallthru
      _
    // Predicated region
    $region38: #{tpu_custom_call.1} parent=1 // pred_check
      _
    $region39: #{tpu_custom_call.1} parent=1 // pred_check_branch
      %81 = sbr.rel (0) target = $region41
    $region40: #{tpu_custom_call.1} parent=1 // pred_region
      %82 = dma.done [#allocation9], 16
    $region41: #{tpu_custom_call.1} parent=1 // pred_fallthru
      _
    %v83 = vld [vmem:[#allocation2] sm:$0xff]
    %v84 = vld [vmem:[#allocation5] sm:$0xff]
    %v85 = vld [vmem:[#allocation5 + $0x8] sm:$0xff]
    %v86 = vld [vmem:[#allocation5 + $0x10] sm:$0xff]
    %v87 = vld [vmem:[#allocation5 + $0x18] sm:$0xff]
    %v88 = vld [vmem:[#allocation5 + $0x20] sm:$0xff]
    %v89 = vld [vmem:[#allocation5 + $0x28] sm:$0xff]
    %v90 = vld [vmem:[#allocation5 + $0x30] sm:$0xff]
    %v91 = vld [vmem:[#allocation5 + $0x38] sm:$0xff]
    %v92 = vld [vmem:[#allocation5 + $0x40] sm:$0xff]
    %v93 = vld [vmem:[#allocation5 + $0x48] sm:$0xff]
    %v94 = vld [vmem:[#allocation5 + $0x50] sm:$0xff]
    %v95 = vld [vmem:[#allocation5 + $0x58] sm:$0xff]
    %v96 = vld [vmem:[#allocation5 + $0x60] sm:$0xff]
    %v97 = vld [vmem:[#allocation5 + $0x68] sm:$0xff]
    %v98 = vld [vmem:[#allocation5 + $0x70] sm:$0xff]
    %v99 = vld [vmem:[#allocation5 + $0x78] sm:$0xff]
    %v100 = vld [vmem:[#allocation5 + $0x80] sm:$0xff]
    %v101 = vld [vmem:[#allocation5 + $0x88] sm:$0xff]
    %v102 = vld [vmem:[#allocation5 + $0x90] sm:$0xff]
    %v103 = vld [vmem:[#allocation5 + $0x98] sm:$0xff]
    %v104 = vld [vmem:[#allocation5 + $0xa0] sm:$0xff]
    %v105 = vld [vmem:[#allocation5 + $0xa8] sm:$0xff]
    %v106 = vld [vmem:[#allocation5 + $0xb0] sm:$0xff]
    %v107 = vld [vmem:[#allocation5 + $0xb8] sm:$0xff]
    %v108 = vld [vmem:[#allocation5 + $0xc0] sm:$0xff]
    %v109 = vld [vmem:[#allocation5 + $0xc8] sm:$0xff]
    %v110 = vld [vmem:[#allocation5 + $0xd0] sm:$0xff]
    %v111 = vld [vmem:[#allocation5 + $0xd8] sm:$0xff]
    %v112 = vld [vmem:[#allocation5 + $0xe0] sm:$0xff]
    %v113 = vld [vmem:[#allocation5 + $0xe8] sm:$0xff]
    %v114 = vld [vmem:[#allocation5 + $0xf0] sm:$0xff]
    %v115 = vld [vmem:[#allocation5 + $0xf8] sm:$0xff]
    %v116 = vld [vmem:[#allocation7] sm:$0x3]
    %v118 = vlaneseq
    %v119 = vshrl.u32 %v118, 7
    %v120 = vsub.s32 0, %v119
    %v121 = vrot.slane %v116, %v120
    %v122 = vlaneseq
    %v123 = vshrl.u32 %v122, 7
    %v124 = vsub.s32 1, %v123
    %v125 = vrot.slane %v116, %v124
    %128 = vmatprep.subr.mxu0 %v85
    %129 = vmatpush1.msra.mxu0 %v84
    %130 = vmatprep.subr.mxu0 %v87
    %131 = vmatpush1.msra.mxu0 %v86
    %132 = vmatprep.subr.mxu0 %v89
    %133 = vmatpush1.msra.mxu0 %v88
    %134 = vmatprep.subr.mxu0 %v91
    %135 = vmatpush1.msra.mxu0 %v90
    %136 = vmatprep.subr.mxu0 %v93
    %137 = vmatpush1.msra.mxu0 %v92
    %138 = vmatprep.subr.mxu0 %v95
    %139 = vmatpush1.msra.mxu0 %v94
    %140 = vmatprep.subr.mxu0 %v97
    %141 = vmatpush1.msra.mxu0 %v96
    %142 = vmatprep.subr.mxu0 %v99
    %143 = vmatpush1.msra.mxu0 %v98
    %144 = vmatprep.subr.mxu0 %v101
    %145 = vmatpush1.msra.mxu0 %v100
    %146 = vmatprep.subr.mxu0 %v103
    %147 = vmatpush1.msra.mxu0 %v102
    %148 = vmatprep.subr.mxu0 %v105
    %149 = vmatpush1.msra.mxu0 %v104
    %150 = vmatprep.subr.mxu0 %v107
    %151 = vmatpush1.msra.mxu0 %v106
    %152 = vmatprep.subr.mxu0 %v109
    %153 = vmatpush1.msra.mxu0 %v108
    %154 = vmatprep.subr.mxu0 %v111
    %155 = vmatpush1.msra.mxu0 %v110
    %156 = vmatprep.subr.mxu0 %v113
    %157 = vmatpush1.msra.mxu0 %v112
    %158 = vmatprep.subr.mxu0 %v115
    %159 = vmatpush1.msra.mxu0 %v114
    %160 = vmatprep.subr.mxu0 0.0
    %161 = vmatpush1.msra.mxu0 0.0
    %162 = vmatprep.subr.mxu0 0.0
    %163 = vmatpush1.msra.mxu0 0.0
    %164 = vmatprep.subr.mxu0 0.0
    %165 = vmatpush1.msra.mxu0 0.0
    %166 = vmatprep.subr.mxu0 0.0
    %167 = vmatpush1.msra.mxu0 0.0
    %168 = vmatprep.subr.mxu0 0.0
    %169 = vmatpush1.msra.mxu0 0.0
    %170 = vmatprep.subr.mxu0 0.0
    %171 = vmatpush1.msra.mxu0 0.0
    %172 = vmatprep.subr.mxu0 0.0
    %173 = vmatpush1.msra.mxu0 0.0
    %174 = vmatprep.subr.mxu0 0.0
    %175 = vmatpush1.msra.mxu0 0.0
    %176 = vmatprep.subr.mxu0 0.0
    %177 = vmatpush1.msra.mxu0 0.0
    %178 = vmatprep.subr.mxu0 0.0
    %179 = vmatpush1.msra.mxu0 0.0
    %180 = vmatprep.subr.mxu0 0.0
    %181 = vmatpush1.msra.mxu0 0.0
    %182 = vmatprep.subr.mxu0 0.0
    %183 = vmatpush1.msra.mxu0 0.0
    %184 = vmatprep.subr.mxu0 0.0
    %185 = vmatpush1.msra.mxu0 0.0
    %186 = vmatprep.subr.mxu0 0.0
    %187 = vmatpush1.msra.mxu0 0.0
    %188 = vmatprep.subr.mxu0 0.0
    %189 = vmatpush1.msra.mxu0 0.0
    %190 = vmatprep.subr.mxu0 0.0
    %191 = vmatpush1.msra.mxu0 0.0
    %192 = vmatprep.mubr.f32.mxu0 0.0
    %193 = vmatmul.mubr.f32.gmra.mrb[0].mxu0 %v83
    %v194 = vpop.f32.mrb[0].mxu0
    %v195 = vadd.f32 %v121, %v194
    %v196 = vpop.f32.mrb[0].mxu0
    %v197 = vadd.f32 %v125, %v196
    %198 = vdwg.mxu0
    %v199 = vmax.f32 %v195, 0.0
    %v200 = vmax.f32 %v197, 0.0
    %v201 = vld [vmem:[#allocation8] sm:$0xff]
    %v202 = vld [vmem:[#allocation8 + $0x8] sm:$0xff]
    %v203 = vld [vmem:[#allocation8 + $0x10] sm:$0xff]
    %v204 = vld [vmem:[#allocation8 + $0x18] sm:$0xff]
    %v205 = vld [vmem:[#allocation8 + $0x20] sm:$0xff]
    %v206 = vld [vmem:[#allocation8 + $0x28] sm:$0xff]
    %v207 = vld [vmem:[#allocation8 + $0x30] sm:$0xff]
    %v208 = vld [vmem:[#allocation8 + $0x38] sm:$0xff]
    %v209 = vld [vmem:[#allocation8 + $0x40] sm:$0xff]
    %v210 = vld [vmem:[#allocation8 + $0x48] sm:$0xff]
    %v211 = vld [vmem:[#allocation8 + $0x50] sm:$0xff]
    %v212 = vld [vmem:[#allocation8 + $0x58] sm:$0xff]
    %v213 = vld [vmem:[#allocation8 + $0x60] sm:$0xff]
    %v214 = vld [vmem:[#allocation8 + $0x68] sm:$0xff]
    %v215 = vld [vmem:[#allocation8 + $0x70] sm:$0xff]
    %v216 = vld [vmem:[#allocation8 + $0x78] sm:$0xff]
    %v217 = vld [vmem:[#allocation8 + $0x80] sm:$0xff]
    %v218 = vld [vmem:[#allocation8 + $0x88] sm:$0xff]
    %v219 = vld [vmem:[#allocation8 + $0x90] sm:$0xff]
    %v220 = vld [vmem:[#allocation8 + $0x98] sm:$0xff]
    %v221 = vld [vmem:[#allocation8 + $0xa0] sm:$0xff]
    %v222 = vld [vmem:[#allocation8 + $0xa8] sm:$0xff]
    %v223 = vld [vmem:[#allocation8 + $0xb0] sm:$0xff]
    %v224 = vld [vmem:[#allocation8 + $0xb8] sm:$0xff]
    %v225 = vld [vmem:[#allocation8 + $0xc0] sm:$0xff]
    %v226 = vld [vmem:[#allocation8 + $0xc8] sm:$0xff]
    %v227 = vld [vmem:[#allocation8 + $0xd0] sm:$0xff]
    %v228 = vld [vmem:[#allocation8 + $0xd8] sm:$0xff]
    %v229 = vld [vmem:[#allocation8 + $0xe0] sm:$0xff]
    %v230 = vld [vmem:[#allocation8 + $0xe8] sm:$0xff]
    %v231 = vld [vmem:[#allocation8 + $0xf0] sm:$0xff]
    %v232 = vld [vmem:[#allocation8 + $0xf8] sm:$0xff]
    %v233 = vld [vmem:[#allocation10] sm:$0x1]
    %v235 = vlaneseq
    %v236 = vshrl.u32 %v235, 7
    %v237 = vsub.s32 0, %v236
    %v238 = vrot.slane %v233, %v237
    %240 = vmatprep.subr.mxu0 0.0
    %241 = vmatpush1.msra.mxu0 %v201
    %242 = vmatprep.subr.mxu0 0.0
    %243 = vmatpush1.msra.mxu0 %v202
    %244 = vmatprep.subr.mxu0 0.0
    %245 = vmatpush1.msra.mxu0 %v203
    %246 = vmatprep.subr.mxu0 0.0
    %247 = vmatpush1.msra.mxu0 %v204
    %248 = vmatprep.subr.mxu0 0.0
    %249 = vmatpush1.msra.mxu0 %v205
    %250 = vmatprep.subr.mxu0 0.0
    %251 = vmatpush1.msra.mxu0 %v206
    %252 = vmatprep.subr.mxu0 0.0
    %253 = vmatpush1.msra.mxu0 %v207
    %254 = vmatprep.subr.mxu0 0.0
    %255 = vmatpush1.msra.mxu0 %v208
    %256 = vmatprep.subr.mxu0 0.0
    %257 = vmatpush1.msra.mxu0 %v209
    %258 = vmatprep.subr.mxu0 0.0
    %259 = vmatpush1.msra.mxu0 %v210
    %260 = vmatprep.subr.mxu0 0.0
    %261 = vmatpush1.msra.mxu0 %v211
    %262 = vmatprep.subr.mxu0 0.0
    %263 = vmatpush1.msra.mxu0 %v212
    %264 = vmatprep.subr.mxu0 0.0
    %265 = vmatpush1.msra.mxu0 %v213
    %266 = vmatprep.subr.mxu0 0.0
    %267 = vmatpush1.msra.mxu0 %v214
    %268 = vmatprep.subr.mxu0 0.0
    %269 = vmatpush1.msra.mxu0 %v215
    %270 = vmatprep.subr.mxu0 0.0
    %271 = vmatpush1.msra.mxu0 %v216
    %272 = vmatprep.subr.mxu0 0.0
    %273 = vmatpush1.msra.mxu0 %v217
    %274 = vmatprep.subr.mxu0 0.0
    %275 = vmatpush1.msra.mxu0 %v218
    %276 = vmatprep.subr.mxu0 0.0
    %277 = vmatpush1.msra.mxu0 %v219
    %278 = vmatprep.subr.mxu0 0.0
    %279 = vmatpush1.msra.mxu0 %v220
    %280 = vmatprep.subr.mxu0 0.0
    %281 = vmatpush1.msra.mxu0 %v221
    %282 = vmatprep.subr.mxu0 0.0
    %283 = vmatpush1.msra.mxu0 %v222
    %284 = vmatprep.subr.mxu0 0.0
    %285 = vmatpush1.msra.mxu0 %v223
    %286 = vmatprep.subr.mxu0 0.0
    %287 = vmatpush1.msra.mxu0 %v224
    %288 = vmatprep.subr.mxu0 0.0
    %289 = vmatpush1.msra.mxu0 %v225
    %290 = vmatprep.subr.mxu0 0.0
    %291 = vmatpush1.msra.mxu0 %v226
    %292 = vmatprep.subr.mxu0 0.0
    %293 = vmatpush1.msra.mxu0 %v227
    %294 = vmatprep.subr.mxu0 0.0
    %295 = vmatpush1.msra.mxu0 %v228
    %296 = vmatprep.subr.mxu0 0.0
    %297 = vmatpush1.msra.mxu0 %v229
    %298 = vmatprep.subr.mxu0 0.0
    %299 = vmatpush1.msra.mxu0 %v230
    %300 = vmatprep.subr.mxu0 0.0
    %301 = vmatpush1.msra.mxu0 %v231
    %302 = vmatprep.subr.mxu0 0.0
    %303 = vmatpush1.msra.mxu0 %v232
    %304 = vmatprep.mubr.f32.mxu0 %v200
    %305 = vmatmul.mubr.f32.gmra.mrb[0].mxu0 %v199
    %v306 = vpop.f32.mrb[0].mxu0
    %v307 = vadd.f32 %v238, %v306
    %v308 = vpop.f32.mrb[0].mxu0
    %309 = vdwg.mxu0
    %v310 = vadd.f32 %v83, %v307
    %311 = vst [vmem:[#allocation11] sm:$0xff] %v310
    // Predicated region
    $region42: #{tpu_custom_call.1} parent=1 // pred_check
      _
    $region43: #{tpu_custom_call.1} parent=1 // pred_check_branch
      %313 = sbr.rel (0) target = $region45
    $region44: #{tpu_custom_call.1} parent=1 // pred_region
      %s315 = ssub.s32 128, 128
      %316 = vsyncadd [#allocation4], %s315
      %s318 = sshll.u32 [#allocation11], 4
      %s319 = int_to_ptr.vmem [resolvable:$true] %s318
      %321 = dma.vmem_to_hbm [thread:$0]  %s319, 128, %s5, [#allocation4]
    $region45: #{tpu_custom_call.1} parent=1 // pred_fallthru
      _
    // Predicated region
    $region46: #{tpu_custom_call.1} parent=1 // pred_check
      _
    $region47: #{tpu_custom_call.1} parent=1 // pred_check_branch
      %323 = sbr.rel (0) target = $region49
    $region48: #{tpu_custom_call.1} parent=1 // pred_region
      %324 = dma.done [#allocation4], 128
    $region49: #{tpu_custom_call.1} parent=1 // pred_fallthru
      _
    %325 = vsyncpa [#allocation3], 1
    %326 = vsyncpa [#allocation6], 1
    %327 = vsyncpa [#allocation9], 1
    %328 = vsyncpa [#allocation4], 1

</llo_original>
